<compile_context>
chip_gen: v5e
topology: v5e:2x2
jax: 0.10.0
libtpu: 0.0.40
codegen_flags: <defaults>
</compile_context>

<pallas_src>
import math
import jax
import jax.numpy as jnp
from jax.experimental import pallas as pl
from jax.experimental.pallas import tpu as pltpu


def gat_kernel(h_ref, w_ref, wa_ref, mask_ref, bias_ref, merged_ref):
    nb, N, Fin = h_ref.shape
    H = wa_ref.shape[1] // 2
    Fout = bias_ref.shape[1]

    w_all = w_ref[...]           # (Fin, H, Fout)
    wa = wa_ref[...]             # (Fin, 2H): cols [0:H) = w@a_src, [H:2H) = w@a_dst
    bias = bias_ref[...]         # (1, Fout)

    # Skip-connection fold: eye_tile[n, hd*N + m] == 1 iff m == n, so
    # eye_tile @ hp_cat == sum_over_heads(h @ w[hd])  (the `skip=True` term).
    row_ids = jax.lax.broadcasted_iota(jnp.int32, (N, H * N), 0)
    col_ids = jax.lax.broadcasted_iota(jnp.int32, (N, H * N), 1)
    eye_tile = ((col_ids % N) == row_ids).astype(jnp.float32)

    for b in range(nb):          # nb == 1 (one batch per TC) or nb == B (single-TC fold)
        h = h_ref[b]                                 # (N, Fin)
        mask = mask_ref[b].astype(jnp.float32)       # (N, N), bf16 -> f32 (values exactly 0/1)

        # --- Fin is tiny (K=2): projections as VPU broadcast-FMAs, not MXU.
        # sd columns [0:H) are the a_src values, [H:2H) the a_dst values, using the
        # algebraic identity (h @ w) @ a == h @ (w @ a) (w@a precomputed in the wrapper).
        sd = h[:, 0:1] * wa[0:1, :]
        for f in range(1, Fin):
            sd = sd + h[:, f:f + 1] * wa[f:f + 1, :]          # (N, 2H)
        src = sd[:, :H]                                       # (N, H)
        dstT = jnp.transpose(sd[:, H:])                       # (H, N), one tiny XLU transpose

        # Per-head transformed features laid out as one (H*N, Fout) slab so the attention
        # aggregation below is a single MXU matmul with K = H*N.
        hp_blocks = []
        for hd in range(H):
            hp_hd = h[:, 0:1] * w_all[0, hd:hd + 1, :]
            for f in range(1, Fin):
                hp_hd = hp_hd + h[:, f:f + 1] * w_all[f, hd:hd + 1, :]
            hp_blocks.append(hp_hd)                           # (N, Fout)
        hp_cat = jnp.concatenate(hp_blocks, axis=0)           # (H*N, Fout), rows = (head, node)

        # --- All-head logits + softmax in one pass: 1 XLU max, 1 XLU sum, 1 EUP reciprocal.
        logits = src[:, :, None] * dstT[None, :, :]           # (N, H, N) outer product on VPU
        logits = jnp.maximum(logits, 0.2 * logits)            # LeakyReLU(0.2): mul + max
        logits = logits - jnp.max(logits, axis=-1, keepdims=True)
        e = jnp.exp(logits)
        recip = pl.reciprocal(jnp.sum(e, axis=-1, keepdims=True), approx=True)
        # TODO(synk): nn.Dropout(p=0.1) is identity in eval mode; no RNG dropout applied.
        # NOTE: mask is applied AFTER softmax (no renormalization) — exactly as in the module.
        attn3 = e * (recip * mask[:, None, :])                # (N, H, N)

        # Lane-dense attention slab: column block hd is head hd's (N, N) attention.
        attn_slab = jnp.concatenate([attn3[:, hd, :] for hd in range(H)], axis=-1)  # (N, H*N)

        # One MXU matmul does the attention aggregation AND the head-summed skip (eye fold).
        out_b = jnp.dot(attn_slab + eye_tile, hp_cat,
                        preferred_element_type=jnp.float32) + bias                   # (N, Fout)

        # Single lane-dense (N, Fout + H*N) = (N, 128) store: unmasked full-width vst.
        merged_ref[b] = jnp.concatenate([out_b, attn_slab], axis=-1)


def gat_forward(h, mask, w, a_src, a_dst, bias):
    B, N, Fin = h.shape
    H, _, Fout = w.shape

    # Weight in (Fin, H, Fout) layout for the in-kernel per-head VPU FMA blocks.
    w_k = jnp.transpose(w, (1, 0, 2))                          # (Fin, H, Fout)
    # Precompute w @ a_src and w @ a_dst per head, fused into one (Fin, 2H) table.
    wa_src = jnp.einsum('hfo,hol->fh', w, a_src)               # (Fin, H)
    wa_dst = jnp.einsum('hfo,hol->fh', w, a_dst)               # (Fin, H)
    wa_fused = jnp.concatenate([wa_src, wa_dst], axis=1)       # (Fin, 2H)

    mask2d = mask.reshape(B, N, N).astype(jnp.bfloat16)        # exact 0/1: halves mask DMA
    bias2d = bias.reshape(1, Fout)

    # Grid choice: fold B into one grid step on single-TC parts (v5e/v6e); keep one batch
    # per TensorCore on dual-TC parts (v7x).
    try:
        kind = jax.devices()[0].device_kind.lower()
    except Exception:
        kind = ""
    single_tc = ("v5" in kind) or ("v6" in kind)
    if single_tc:
        grid, bb = (1,), B
    else:
        grid, bb = (B,), 1

    Fslab = Fout + H * N
    merged = pl.pallas_call(
        gat_kernel,
        out_shape=jax.ShapeDtypeStruct((B, N, Fslab), jnp.float32),
        grid=grid,
        in_specs=[
            pl.BlockSpec((bb, N, Fin), lambda b: (b, 0, 0)),       # h
            pl.BlockSpec((Fin, H, Fout), lambda b: (0, 0, 0)),     # w (Fin, H, Fout)
            pl.BlockSpec((Fin, 2 * H), lambda b: (0, 0)),          # fused w@a_src | w@a_dst
            pl.BlockSpec((bb, N, N), lambda b: (b, 0, 0)),         # mask (bf16)
            pl.BlockSpec((1, Fout), lambda b: (0, 0)),             # bias
        ],
        out_specs=pl.BlockSpec((bb, N, Fslab), lambda b: (b, 0, 0)),
        compiler_params=pltpu.CompilerParams(
            dimension_semantics=("parallel",)),
    )(h, w_k, wa_fused, mask2d, bias2d)

    # Layout plumbing only: split the merged slab and reshape attn to (B, H, N, N).
    out = merged[:, :, :Fout]
    attn = merged[:, :, Fout:].reshape(B, N, H, N).transpose(0, 2, 1, 3)
    return out, attn


def gat_reference(h, mask, w, a_src, a_dst, bias):
    h_prime = jnp.einsum('bnf,hfo->bhno', h, w)                       # (B,H,N,Fout)
    attn_src = jnp.einsum('bhno,hoi->bhni', h_prime, a_src)           # (B,H,N,1)
    attn_dst = jnp.einsum('bhno,hoi->bhni', h_prime, a_dst)           # (B,H,N,1)
    attn = attn_src @ jnp.swapaxes(attn_dst, -1, -2)                  # (B,H,N,N)
    attn = jnp.where(attn > 0, attn, 0.2 * attn)
    attn = jax.nn.softmax(attn, axis=-1)
    attn = attn * mask
    out = jnp.einsum('bhnm,bhmo->bhno', attn, h_prime).sum(axis=1) + bias
    out = out + h_prime.sum(axis=1)                                   # skip=True
    return out, attn


if __name__ == "__main__":
    key = jax.random.PRNGKey(0)
    B, N = 2, 16
    in_feat, out_feat, n_head = 2, 64, 4

    k_h, k_m, k_w, k_s, k_d = jax.random.split(key, 5)
    h = jax.random.normal(k_h, (B, N, in_feat), dtype=jnp.float32)
    mask = (jax.random.uniform(k_m, (B, 1, N, N)) > 0.3).astype(jnp.float32)

    gain = 1.414

    def xavier(k, shape):
        recep = math.prod(shape[2:]) if len(shape) > 2 else 1
        fan_in = shape[1] * recep
        fan_out = shape[0] * recep
        bound = gain * math.sqrt(6.0 / (fan_in + fan_out))
        return jax.random.uniform(k, shape, jnp.float32, -bound, bound)

    w = xavier(k_w, (n_head, in_feat, out_feat))
    a_src = xavier(k_s, (n_head, out_feat, 1))
    a_dst = xavier(k_d, (n_head, out_feat, 1))
    bias = jnp.zeros((out_feat,), jnp.float32)

    out, attn = gat_forward(h, mask, w, a_src, a_dst, bias)
    out = jax.block_until_ready(out)
    attn = jax.block_until_ready(attn)

    ref_out, ref_attn = gat_reference(h, mask, w, a_src, a_dst, bias)
    assert out.shape == (B, N, out_feat) and attn.shape == (B, n_head, N, N)
    # Tolerance covers the EUP approximate reciprocal in the softmax denominator and the
    # (mathematically exact) re-associated projection / contraction order.
    assert jnp.allclose(out, ref_out, atol=1e-2, rtol=1e-2), "out mismatch"
    assert jnp.allclose(attn, ref_attn, atol=1e-2, rtol=1e-2), "attn mismatch"
    print("KERNEL_OK")
</pallas_src>

<mosaic_0001>
module attributes {stable_mosaic.version = 11 : i64} {
  func.func @gat_kernel(%arg0: i32, %arg1: memref<1x16x2xf32, #tpu.memory_space<vmem>>, %arg2: memref<2x4x64xf32, #tpu.memory_space<vmem>>, %arg3: memref<2x8xf32, #tpu.memory_space<vmem>>, %arg4: memref<1x16x16xbf16, #tpu.memory_space<vmem>>, %arg5: memref<1x64xf32, #tpu.memory_space<vmem>>, %arg6: memref<1x16x128xf32, #tpu.memory_space<vmem>>) attributes {dimension_semantics = [#tpu.dimension_semantics<parallel>], iteration_bounds = array<i64: 2>, scalar_prefetch = 0 : i64, scratch_operands = 0 : i64, tpu.core_type = #tpu.core_type<tc>, window_params = [{transform_indices = @transform_0, window_bounds = array<i64: 1, 16, 2>}, {pipeline_mode = #tpu.pipeline_mode<synchronous>, transform_indices = @transform_1, window_bounds = array<i64: 2, 4, 64>}, {pipeline_mode = #tpu.pipeline_mode<synchronous>, transform_indices = @transform_2, window_bounds = array<i64: 2, 8>}, {transform_indices = @transform_3, window_bounds = array<i64: 1, 16, 16>}, {pipeline_mode = #tpu.pipeline_mode<synchronous>, transform_indices = @transform_4, window_bounds = array<i64: 1, 64>}, {transform_indices = @transform_5, window_bounds = array<i64: 1, 16, 128>}]} {
    %c0 = arith.constant 0 : index
    %c0_0 = arith.constant 0 : index
    %c0_1 = arith.constant 0 : index
    %0 = vector.load %arg2[%c0, %c0_0, %c0_1] : memref<2x4x64xf32, #tpu.memory_space<vmem>>, vector<2x4x64xf32>
    %c0_2 = arith.constant 0 : index
    %c0_3 = arith.constant 0 : index
    %1 = vector.load %arg3[%c0_2, %c0_3] : memref<2x8xf32, #tpu.memory_space<vmem>>, vector<2x8xf32>
    %c0_4 = arith.constant 0 : index
    %c0_5 = arith.constant 0 : index
    %2 = vector.load %arg5[%c0_4, %c0_5] : memref<1x64xf32, #tpu.memory_space<vmem>>, vector<1x64xf32>
    %3 = tpu.iota {dimensions = array<i32: 0>} : vector<16x64xi32>
    %4 = tpu.iota {dimensions = array<i32: 1>} : vector<16x64xi32>
    %c16_i32 = arith.constant 16 : i32
    %c0_i32 = arith.constant 0 : i32
    %5 = arith.cmpi eq, %c16_i32, %c0_i32 : i32
    %c1_i32 = arith.constant 1 : i32
    %6 = arith.select %5, %c1_i32, %c16_i32 : i32
    %7 = vector.broadcast %6 : i32 to vector<16x64xi32>
    %8 = arith.remsi %4, %7 : vector<16x64xi32>
    %c0_i32_6 = arith.constant 0 : i32
    %9 = vector.broadcast %c0_i32_6 : i32 to vector<16x64xi32>
    %10 = arith.cmpi ne, %8, %9 : vector<16x64xi32>
    %c0_i32_7 = arith.constant 0 : i32
    %11 = vector.broadcast %c0_i32_7 : i32 to vector<16x64xi32>
    %12 = arith.cmpi slt, %8, %11 : vector<16x64xi32>
    %c0_i32_8 = arith.constant 0 : i32
    %13 = arith.cmpi slt, %6, %c0_i32_8 : i32
    %14 = vector.broadcast %13 : i1 to vector<16x64xi1>
    %15 = vector.broadcast %14 : vector<16x64xi1> to vector<16x64xi1>
    %16 = arith.xori %12, %15 : vector<16x64xi1>
    %17 = arith.andi %16, %10 : vector<16x64xi1>
    %18 = vector.broadcast %6 : i32 to vector<16x64xi32>
    %19 = arith.addi %8, %18 : vector<16x64xi32>
    %20 = arith.select %17, %19, %8 : vector<16x64xi1>, vector<16x64xi32>
    %21 = arith.cmpi eq, %20, %3 : vector<16x64xi32>
    %22 = arith.extui %21 : vector<16x64xi1> to vector<16x64xi32>
    %23 = arith.sitofp %22 : vector<16x64xi32> to vector<16x64xf32>
    %c0_9 = arith.constant 0 : index
    %c0_10 = arith.constant 0 : index
    %c0_11 = arith.constant 0 : index
    %24 = vector.load %arg1[%c0_9, %c0_10, %c0_11] : memref<1x16x2xf32, #tpu.memory_space<vmem>>, vector<1x16x2xf32>
    %25 = vector.shape_cast %24 : vector<1x16x2xf32> to vector<16x2xf32>
    %c0_12 = arith.constant 0 : index
    %c0_13 = arith.constant 0 : index
    %c0_14 = arith.constant 0 : index
    %26 = vector.load %arg4[%c0_12, %c0_13, %c0_14] : memref<1x16x16xbf16, #tpu.memory_space<vmem>>, vector<1x16x16xbf16>
    %27 = vector.shape_cast %26 : vector<1x16x16xbf16> to vector<16x16xbf16>
    %28 = arith.extf %27 : vector<16x16xbf16> to vector<16x16xf32>
    %29 = vector.extract_strided_slice %25 {offsets = [0, 0], sizes = [16, 1], strides = [1, 1]} : vector<16x2xf32> to vector<16x1xf32>
    %30 = vector.extract_strided_slice %1 {offsets = [0, 0], sizes = [1, 8], strides = [1, 1]} : vector<2x8xf32> to vector<1x8xf32>
    %31 = vector.broadcast %29 : vector<16x1xf32> to vector<16x8xf32>
    %32 = vector.broadcast %30 : vector<1x8xf32> to vector<16x8xf32>
    %33 = arith.mulf %31, %32 : vector<16x8xf32>
    %34 = vector.extract_strided_slice %25 {offsets = [0, 1], sizes = [16, 1], strides = [1, 1]} : vector<16x2xf32> to vector<16x1xf32>
    %35 = vector.extract_strided_slice %1 {offsets = [1, 0], sizes = [1, 8], strides = [1, 1]} : vector<2x8xf32> to vector<1x8xf32>
    %36 = vector.broadcast %34 : vector<16x1xf32> to vector<16x8xf32>
    %37 = vector.broadcast %35 : vector<1x8xf32> to vector<16x8xf32>
    %38 = arith.mulf %36, %37 : vector<16x8xf32>
    %39 = arith.addf %33, %38 : vector<16x8xf32>
    %40 = vector.extract_strided_slice %39 {offsets = [0, 0], sizes = [16, 4], strides = [1, 1]} : vector<16x8xf32> to vector<16x4xf32>
    %41 = vector.extract_strided_slice %39 {offsets = [0, 4], sizes = [16, 4], strides = [1, 1]} : vector<16x8xf32> to vector<16x4xf32>
    %42 = tpu.transpose %41, [1, 0] : vector<16x4xf32> -> vector<4x16xf32>
    %43 = vector.extract_strided_slice %25 {offsets = [0, 0], sizes = [16, 1], strides = [1, 1]} : vector<16x2xf32> to vector<16x1xf32>
    %44 = vector.extract_strided_slice %0 {offsets = [0, 0, 0], sizes = [1, 1, 64], strides = [1, 1, 1]} : vector<2x4x64xf32> to vector<1x1x64xf32>
    %45 = vector.shape_cast %44 : vector<1x1x64xf32> to vector<1x64xf32>
    %46 = vector.broadcast %43 : vector<16x1xf32> to vector<16x64xf32>
    %47 = vector.broadcast %45 : vector<1x64xf32> to vector<16x64xf32>
    %48 = arith.mulf %46, %47 : vector<16x64xf32>
    %49 = vector.extract_strided_slice %25 {offsets = [0, 1], sizes = [16, 1], strides = [1, 1]} : vector<16x2xf32> to vector<16x1xf32>
    %50 = vector.extract_strided_slice %0 {offsets = [1, 0, 0], sizes = [1, 1, 64], strides = [1, 1, 1]} : vector<2x4x64xf32> to vector<1x1x64xf32>
    %51 = vector.shape_cast %50 : vector<1x1x64xf32> to vector<1x64xf32>
    %52 = vector.broadcast %49 : vector<16x1xf32> to vector<16x64xf32>
    %53 = vector.broadcast %51 : vector<1x64xf32> to vector<16x64xf32>
    %54 = arith.mulf %52, %53 : vector<16x64xf32>
    %55 = arith.addf %48, %54 : vector<16x64xf32>
    %56 = vector.extract_strided_slice %25 {offsets = [0, 0], sizes = [16, 1], strides = [1, 1]} : vector<16x2xf32> to vector<16x1xf32>
    %57 = vector.extract_strided_slice %0 {offsets = [0, 1, 0], sizes = [1, 1, 64], strides = [1, 1, 1]} : vector<2x4x64xf32> to vector<1x1x64xf32>
    %58 = vector.shape_cast %57 : vector<1x1x64xf32> to vector<1x64xf32>
    %59 = vector.broadcast %56 : vector<16x1xf32> to vector<16x64xf32>
    %60 = vector.broadcast %58 : vector<1x64xf32> to vector<16x64xf32>
    %61 = arith.mulf %59, %60 : vector<16x64xf32>
    %62 = vector.extract_strided_slice %25 {offsets = [0, 1], sizes = [16, 1], strides = [1, 1]} : vector<16x2xf32> to vector<16x1xf32>
    %63 = vector.extract_strided_slice %0 {offsets = [1, 1, 0], sizes = [1, 1, 64], strides = [1, 1, 1]} : vector<2x4x64xf32> to vector<1x1x64xf32>
    %64 = vector.shape_cast %63 : vector<1x1x64xf32> to vector<1x64xf32>
    %65 = vector.broadcast %62 : vector<16x1xf32> to vector<16x64xf32>
    %66 = vector.broadcast %64 : vector<1x64xf32> to vector<16x64xf32>
    %67 = arith.mulf %65, %66 : vector<16x64xf32>
    %68 = arith.addf %61, %67 : vector<16x64xf32>
    %69 = vector.extract_strided_slice %25 {offsets = [0, 0], sizes = [16, 1], strides = [1, 1]} : vector<16x2xf32> to vector<16x1xf32>
    %70 = vector.extract_strided_slice %0 {offsets = [0, 2, 0], sizes = [1, 1, 64], strides = [1, 1, 1]} : vector<2x4x64xf32> to vector<1x1x64xf32>
    %71 = vector.shape_cast %70 : vector<1x1x64xf32> to vector<1x64xf32>
    %72 = vector.broadcast %69 : vector<16x1xf32> to vector<16x64xf32>
    %73 = vector.broadcast %71 : vector<1x64xf32> to vector<16x64xf32>
    %74 = arith.mulf %72, %73 : vector<16x64xf32>
    %75 = vector.extract_strided_slice %25 {offsets = [0, 1], sizes = [16, 1], strides = [1, 1]} : vector<16x2xf32> to vector<16x1xf32>
    %76 = vector.extract_strided_slice %0 {offsets = [1, 2, 0], sizes = [1, 1, 64], strides = [1, 1, 1]} : vector<2x4x64xf32> to vector<1x1x64xf32>
    %77 = vector.shape_cast %76 : vector<1x1x64xf32> to vector<1x64xf32>
    %78 = vector.broadcast %75 : vector<16x1xf32> to vector<16x64xf32>
    %79 = vector.broadcast %77 : vector<1x64xf32> to vector<16x64xf32>
    %80 = arith.mulf %78, %79 : vector<16x64xf32>
    %81 = arith.addf %74, %80 : vector<16x64xf32>
    %82 = vector.extract_strided_slice %25 {offsets = [0, 0], sizes = [16, 1], strides = [1, 1]} : vector<16x2xf32> to vector<16x1xf32>
    %83 = vector.extract_strided_slice %0 {offsets = [0, 3, 0], sizes = [1, 1, 64], strides = [1, 1, 1]} : vector<2x4x64xf32> to vector<1x1x64xf32>
    %84 = vector.shape_cast %83 : vector<1x1x64xf32> to vector<1x64xf32>
    %85 = vector.broadcast %82 : vector<16x1xf32> to vector<16x64xf32>
    %86 = vector.broadcast %84 : vector<1x64xf32> to vector<16x64xf32>
    %87 = arith.mulf %85, %86 : vector<16x64xf32>
    %88 = vector.extract_strided_slice %25 {offsets = [0, 1], sizes = [16, 1], strides = [1, 1]} : vector<16x2xf32> to vector<16x1xf32>
    %89 = vector.extract_strided_slice %0 {offsets = [1, 3, 0], sizes = [1, 1, 64], strides = [1, 1, 1]} : vector<2x4x64xf32> to vector<1x1x64xf32>
    %90 = vector.shape_cast %89 : vector<1x1x64xf32> to vector<1x64xf32>
    %91 = vector.broadcast %88 : vector<16x1xf32> to vector<16x64xf32>
    %92 = vector.broadcast %90 : vector<1x64xf32> to vector<16x64xf32>
    %93 = arith.mulf %91, %92 : vector<16x64xf32>
    %94 = arith.addf %87, %93 : vector<16x64xf32>
    %95 = tpu.concatenate %55, %68, %81, %94 in 0 : vector<16x64xf32>, vector<16x64xf32>, vector<16x64xf32>, vector<16x64xf32> -> vector<64x64xf32>
    %96 = vector.shape_cast %40 : vector<16x4xf32> to vector<16x4x1xf32>
    %97 = vector.shape_cast %42 : vector<4x16xf32> to vector<1x4x16xf32>
    %98 = vector.broadcast %96 : vector<16x4x1xf32> to vector<16x4x16xf32>
    %99 = vector.broadcast %97 : vector<1x4x16xf32> to vector<16x4x16xf32>
    %100 = arith.mulf %98, %99 : vector<16x4x16xf32>
    %cst = arith.constant 2.000000e-01 : f32
    %101 = vector.broadcast %cst : f32 to vector<16x4x16xf32>
    %102 = arith.mulf %101, %100 : vector<16x4x16xf32>
    %103 = arith.maximumf %100, %102 : vector<16x4x16xf32>
    %cst_15 = arith.constant dense<0xFF800000> : vector<16x4xf32>
    %104 = vector.multi_reduction <maximumf>, %103, %cst_15 [2] : vector<16x4x16xf32> to vector<16x4xf32>
    %105 = vector.shape_cast %104 : vector<16x4xf32> to vector<16x4x1xf32>
    %106 = vector.broadcast %105 : vector<16x4x1xf32> to vector<16x4x16xf32>
    %107 = arith.subf %103, %106 : vector<16x4x16xf32>
    %108 = math.exp %107 : vector<16x4x16xf32>
    %cst_16 = arith.constant dense<0.000000e+00> : vector<16x4xf32>
    %109 = vector.multi_reduction <add>, %108, %cst_16 [2] : vector<16x4x16xf32> to vector<16x4xf32>
    %110 = vector.shape_cast %109 : vector<16x4xf32> to vector<16x4x1xf32>
    %111 = tpu.reciprocal %110 {approx = true} : vector<16x4x1xf32> -> vector<16x4x1xf32>
    %112 = vector.shape_cast %28 : vector<16x16xf32> to vector<16x1x16xf32>
    %113 = vector.broadcast %111 : vector<16x4x1xf32> to vector<16x4x16xf32>
    %114 = vector.broadcast %112 : vector<16x1x16xf32> to vector<16x4x16xf32>
    %115 = arith.mulf %113, %114 : vector<16x4x16xf32>
    %116 = arith.mulf %108, %115 : vector<16x4x16xf32>
    %117 = vector.extract_strided_slice %116 {offsets = [0, 0, 0], sizes = [16, 1, 16], strides = [1, 1, 1]} : vector<16x4x16xf32> to vector<16x1x16xf32>
    %118 = vector.shape_cast %117 : vector<16x1x16xf32> to vector<16x16xf32>
    %119 = vector.extract_strided_slice %116 {offsets = [0, 1, 0], sizes = [16, 1, 16], strides = [1, 1, 1]} : vector<16x4x16xf32> to vector<16x1x16xf32>
    %120 = vector.shape_cast %119 : vector<16x1x16xf32> to vector<16x16xf32>
    %121 = vector.extract_strided_slice %116 {offsets = [0, 2, 0], sizes = [16, 1, 16], strides = [1, 1, 1]} : vector<16x4x16xf32> to vector<16x1x16xf32>
    %122 = vector.shape_cast %121 : vector<16x1x16xf32> to vector<16x16xf32>
    %123 = vector.extract_strided_slice %116 {offsets = [0, 3, 0], sizes = [16, 1, 16], strides = [1, 1, 1]} : vector<16x4x16xf32> to vector<16x1x16xf32>
    %124 = vector.shape_cast %123 : vector<16x1x16xf32> to vector<16x16xf32>
    %125 = tpu.concatenate %118, %120, %122, %124 in 1 : vector<16x16xf32>, vector<16x16xf32>, vector<16x16xf32>, vector<16x16xf32> -> vector<16x64xf32>
    %126 = arith.addf %125, %23 : vector<16x64xf32>
    %cst_17 = arith.constant dense<0.000000e+00> : vector<16x64xf32>
    %127 = tpu.matmul %126, %95, %cst_17 {dimension_numbers = #tpu.dot_dimension_numbers<[1], [0], [0], [1], [0, 0, 1, 1], [], []>} : vector<16x64xf32>, vector<64x64xf32>, vector<16x64xf32> -> vector<16x64xf32>
    %128 = vector.broadcast %2 : vector<1x64xf32> to vector<16x64xf32>
    %129 = arith.addf %127, %128 : vector<16x64xf32>
    %130 = tpu.concatenate %129, %125 in 1 : vector<16x64xf32>, vector<16x64xf32> -> vector<16x128xf32>
    %c0_18 = arith.constant 0 : index
    %c0_19 = arith.constant 0 : index
    %c0_20 = arith.constant 0 : index
    %131 = vector.load %arg6[%c0_18, %c0_19, %c0_20] : memref<1x16x128xf32, #tpu.memory_space<vmem>>, vector<1x16x128xf32>
    %132 = vector.shape_cast %131 : vector<1x16x128xf32> to vector<16x128xf32>
    %133 = vector.shape_cast %130 : vector<16x128xf32> to vector<1x16x128xf32>
    tpu.vector_store %arg6[%c0_18, %c0_19, %c0_20], %133 {strides = array<i32>} : memref<1x16x128xf32, #tpu.memory_space<vmem>>, vector<1x16x128xf32>,
    return
  }
  func.func @transform_0(%arg0: i32) -> (i32, i32, i32) {
    %c0_i32 = arith.constant 0 : i32
    %c0_i32_0 = arith.constant 0 : i32
    %c0_i32_1 = arith.constant 0 : i32
    return %arg0, %c0_i32, %c0_i32_0 : i32, i32, i32
  }
  func.func @transform_1(%arg0: i32) -> (i32, i32, i32) {
    %c0_i32 = arith.constant 0 : i32
    %c0_i32_0 = arith.constant 0 : i32
    %c0_i32_1 = arith.constant 0 : i32
    %c0_i32_2 = arith.constant 0 : i32
    return %c0_i32, %c0_i32_0, %c0_i32_1 : i32, i32, i32
  }
  func.func @transform_2(%arg0: i32) -> (i32, i32) {
    %c0_i32 = arith.constant 0 : i32
    %c0_i32_0 = arith.constant 0 : i32
    %c0_i32_1 = arith.constant 0 : i32
    return %c0_i32, %c0_i32_0 : i32, i32
  }
  func.func @transform_3(%arg0: i32) -> (i32, i32, i32) {
    %c0_i32 = arith.constant 0 : i32
    %c0_i32_0 = arith.constant 0 : i32
    %c0_i32_1 = arith.constant 0 : i32
    return %arg0, %c0_i32, %c0_i32_0 : i32, i32, i32
  }
  func.func @transform_4(%arg0: i32) -> (i32, i32) {
    %c0_i32 = arith.constant 0 : i32
    %c0_i32_0 = arith.constant 0 : i32
    %c0_i32_1 = arith.constant 0 : i32
    return %c0_i32, %c0_i32_0 : i32, i32
  }
  func.func @transform_5(%arg0: i32) -> (i32, i32, i32) {
    %c0_i32 = arith.constant 0 : i32
    %c0_i32_0 = arith.constant 0 : i32
    %c0_i32_1 = arith.constant 0 : i32
    return %arg0, %c0_i32, %c0_i32_0 : i32, i32, i32
  }
}

</mosaic_0001>

<llo_original>
// kernel: tpu_custom_call.1
$region0: #{tpu_custom_call.1}
  #allocation0 [shape = 'u32[]', space=smem, size = 0x4, offset = 0x4, fixed_abs, tag = 'smem constant byte address 0x4 - core index']
  #allocation1 [shape = 'u32[72,128]{1,0:T(1,128)}', space=vmem, size = 0x9000, scoped, tag = 'internal scratch']
  %s0 = inlined_call_operand.vmem [shape: f32[2,16,2], index: 0, kind: input, shape index: {}]
  %s1 = inlined_call_operand.vmem [shape: f32[2,4,64], index: 1, kind: input, shape index: {}]
  %s2 = inlined_call_operand.vmem [shape: f32[2,8], index: 2, kind: input, shape index: {}]
  %s3 = inlined_call_operand.vmem [shape: bf16[2,16,16], index: 3, kind: input, shape index: {}]
  %s4 = inlined_call_operand.vmem [shape: f32[1,64], index: 4, kind: input, shape index: {}]
  %s5 = inlined_call_operand.hbm [shape: f32[2,16,128], index: 5, kind: output, shape index: {}]
  %s6 = sld [smem:[#allocation0]]
  $region53: #{tpu_custom_call.1} parent=0
    _
  %s8 = ssub.s32 1, %s6
  %s9 = scalar_select 0, %s8, %s6
  $region1: #{tpu_custom_call.1} parent=0
    #allocation2 [shape = 'u8[16384]{0}', space=vmem, size = 0x4000, scoped, tag = 'output window, operand 0']
    #allocation3 [shape = 's32[2]{0}', space=sflag, size = 0x8, scoped, tag = 'scoped memory for tpu_custom_call.1']
    %10 = vsyncpa [#allocation3], 0
    %s11 = scalar_lea.sflag [#allocation3], 1
    %12 = vsyncpa %s11, 0
    loop: start=0, step=1, limit=4
    $region2: #{tpu_custom_call.1} parent=1 // loop_pre_header
      _
    $region3: #{tpu_custom_call.1} parent=1 // loop_header
      %s14 = sphi 0, %s18
      %p15 = scmp.ge.s32.totalorder %s14, 4
      %s24 = sphi 0, %s26
      %s27 = sphi 0, %s24
      %s28 = sphi 0, %s27
      %s44 = sphi 0, %s28
      %s48 = sphi 0, %s48
      %s50 = sphi 0, %s48
      %s51 = sphi 0, %s50
      %s65 = sphi 0, %s51
      %s69 = sphi 0, %s69
      %s71 = sphi 0, %s69
      %s72 = sphi 0, %s71
      %s86 = sphi 0, %s72
      %s92 = sphi 0, %s94
      %s95 = sphi 0, %s92
      %s96 = sphi 0, %s95
      %s112 = sphi 0, %s96
      %s116 = sphi 0, %s116
      %s118 = sphi 0, %s116
      %s119 = sphi 0, %s118
      %s133 = sphi 0, %s119
      %s139 = sphi 0, %s141
      %s142 = sphi 0, %s139
      %s143 = sphi 0, %s142
      %s159 = sphi 0, %s143
    $region4: #{tpu_custom_call.1} parent=1 // loop_header_branch
      %17 = sbr.rel (%p15) target = $region8
    $region5: #{tpu_custom_call.1} parent=1 // loop_body
      %s19 = ssub.s32 %s14, 1
      %s20 = ssub.s32 %s14, 2
      %s21 = sadd.s32 %s14, 1
      %s22 = ssub.s32 %s14, %s21
      %p23 = scmp.eq.s32.totalorder %s22, 0
      %s25 = sadd.s32 %s24, 1
      %s26 = scalar_select %p23, %s24, %s25
      %p29 = pneg %p23
      %p30 = scmp.eq.s32.totalorder %s14, 1
      %p31 = por %p29, %p30
      %p32 = scmp.ne.s32.totalorder %s24, %s27
      %p33 = scmp.eq.s32.totalorder %s14, 0
      %p34 = por %p32, %p33
      %p35 = scmp.ne.s32.totalorder %s24, %s27
      %p36 = scmp.eq.s32.totalorder %s19, 1
      %p37 = por %p35, %p36
      %p38 = scmp.ne.s32.totalorder %s27, %s28
      %p39 = scmp.eq.s32.totalorder %s19, 0
      %p40 = por %p38, %p39
      %p41 = scmp.ne.s32.totalorder %s27, %s28
      %p42 = scmp.eq.s32.totalorder %s20, 1
      %p43 = por %p41, %p42
      %p45 = scmp.ne.s32.totalorder %s28, %s44
      %p46 = scmp.eq.s32.totalorder %s20, 0
      %p47 = por %p45, %p46
      %s49 = sadd.s32 %s48, 1
      %p52 = scmp.eq.s32.totalorder %s14, 1
      %p53 = scmp.ne.s32.totalorder %s48, %s50
      %p54 = scmp.eq.s32.totalorder %s14, 0
      %p55 = por %p53, %p54
      %p56 = scmp.ne.s32.totalorder %s48, %s50
      %p57 = scmp.eq.s32.totalorder %s19, 1
      %p58 = por %p56, %p57
      %p59 = scmp.ne.s32.totalorder %s50, %s51
      %p60 = scmp.eq.s32.totalorder %s19, 0
      %p61 = por %p59, %p60
      %p62 = scmp.ne.s32.totalorder %s50, %s51
      %p63 = scmp.eq.s32.totalorder %s20, 1
      %p64 = por %p62, %p63
      %p66 = scmp.ne.s32.totalorder %s51, %s65
      %p67 = scmp.eq.s32.totalorder %s20, 0
      %p68 = por %p66, %p67
      %s70 = sadd.s32 %s69, 1
      %p73 = scmp.eq.s32.totalorder %s14, 1
      %p74 = scmp.ne.s32.totalorder %s69, %s71
      %p75 = scmp.eq.s32.totalorder %s14, 0
      %p76 = por %p74, %p75
      %p77 = scmp.ne.s32.totalorder %s69, %s71
      %p78 = scmp.eq.s32.totalorder %s19, 1
      %p79 = por %p77, %p78
      %p80 = scmp.ne.s32.totalorder %s71, %s72
      %p81 = scmp.eq.s32.totalorder %s19, 0
      %p82 = por %p80, %p81
      %p83 = scmp.ne.s32.totalorder %s71, %s72
      %p84 = scmp.eq.s32.totalorder %s20, 1
      %p85 = por %p83, %p84
      %p87 = scmp.ne.s32.totalorder %s72, %s86
      %p88 = scmp.eq.s32.totalorder %s20, 0
      %p89 = por %p87, %p88
      %s90 = ssub.s32 %s14, %s21
      %p91 = scmp.eq.s32.totalorder %s90, 0
      %s93 = sadd.s32 %s92, 1
      %s94 = scalar_select %p91, %s92, %s93
      %p97 = pneg %p91
      %p98 = scmp.eq.s32.totalorder %s14, 1
      %p99 = por %p97, %p98
      %p100 = scmp.ne.s32.totalorder %s92, %s95
      %p101 = scmp.eq.s32.totalorder %s14, 0
      %p102 = por %p100, %p101
      %p103 = scmp.ne.s32.totalorder %s92, %s95
      %p104 = scmp.eq.s32.totalorder %s19, 1
      %p105 = por %p103, %p104
      %p106 = scmp.ne.s32.totalorder %s95, %s96
      %p107 = scmp.eq.s32.totalorder %s19, 0
      %p108 = por %p106, %p107
      %p109 = scmp.ne.s32.totalorder %s95, %s96
      %p110 = scmp.eq.s32.totalorder %s20, 1
      %p111 = por %p109, %p110
      %p113 = scmp.ne.s32.totalorder %s96, %s112
      %p114 = scmp.eq.s32.totalorder %s20, 0
      %p115 = por %p113, %p114
      %s117 = sadd.s32 %s116, 1
      %p120 = scmp.eq.s32.totalorder %s14, 1
      %p121 = scmp.ne.s32.totalorder %s116, %s118
      %p122 = scmp.eq.s32.totalorder %s14, 0
      %p123 = por %p121, %p122
      %p124 = scmp.ne.s32.totalorder %s116, %s118
      %p125 = scmp.eq.s32.totalorder %s19, 1
      %p126 = por %p124, %p125
      %p127 = scmp.ne.s32.totalorder %s118, %s119
      %p128 = scmp.eq.s32.totalorder %s19, 0
      %p129 = por %p127, %p128
      %p130 = scmp.ne.s32.totalorder %s118, %s119
      %p131 = scmp.eq.s32.totalorder %s20, 1
      %p132 = por %p130, %p131
      %p134 = scmp.ne.s32.totalorder %s119, %s133
      %p135 = scmp.eq.s32.totalorder %s20, 0
      %p136 = por %p134, %p135
      %s137 = ssub.s32 %s14, %s21
      %p138 = scmp.eq.s32.totalorder %s137, 0
      %s140 = sadd.s32 %s139, 1
      %s141 = scalar_select %p138, %s139, %s140
      %p144 = pneg %p138
      %p145 = scmp.eq.s32.totalorder %s14, 1
      %p146 = por %p144, %p145
      %p147 = scmp.ne.s32.totalorder %s139, %s142
      %p148 = scmp.eq.s32.totalorder %s14, 0
      %p149 = por %p147, %p148
      %p150 = scmp.ne.s32.totalorder %s139, %s142
      %p151 = scmp.eq.s32.totalorder %s19, 1
      %p152 = por %p150, %p151
      %p153 = scmp.ne.s32.totalorder %s142, %s143
      %p154 = scmp.eq.s32.totalorder %s19, 0
      %p155 = por %p153, %p154
      %p156 = scmp.ne.s32.totalorder %s142, %s143
      %p157 = scmp.eq.s32.totalorder %s20, 1
      %p158 = por %p156, %p157
      %p160 = scmp.ne.s32.totalorder %s143, %s159
      %p161 = scmp.eq.s32.totalorder %s20, 0
      %p162 = por %p160, %p161
      %p163 = scmp.le.s32.totalorder 1, %s14
      %p164 = scmp.lt.s32.totalorder %s14, 3
      %p165 = pnand %p163, %p164
      %p166 = pneg %p165
      // Predicated region
      $region9: #{tpu_custom_call.1} parent=5 // pred_check
        _
      $region10: #{tpu_custom_call.1} parent=5 // pred_check_branch
        %168 = sbr.rel (%p165) target = $region12
      $region11: #{tpu_custom_call.1} parent=5 // pred_region
        %s169 = ssub.s32 %s14, 1
        // Predicated region
        $region13: #{tpu_custom_call.1} parent=11 // pred_check
          %p170 = pneg %p61
        $region14: #{tpu_custom_call.1} parent=11 // pred_check_branch
          %172 = sbr.rel (%p170) target = $region16
        $region15: #{tpu_custom_call.1} parent=11 // pred_region
          _
        $region16: #{tpu_custom_call.1} parent=11 // pred_fallthru
          _
        // Predicated region
        $region17: #{tpu_custom_call.1} parent=11 // pred_check
          %p173 = pneg %p82
        $region18: #{tpu_custom_call.1} parent=11 // pred_check_branch
          %175 = sbr.rel (%p173) target = $region20
        $region19: #{tpu_custom_call.1} parent=11 // pred_region
          _
        $region20: #{tpu_custom_call.1} parent=11 // pred_fallthru
          _
        // Predicated region
        $region21: #{tpu_custom_call.1} parent=11 // pred_check
          %p176 = pneg %p129
        $region22: #{tpu_custom_call.1} parent=11 // pred_check_branch
          %178 = sbr.rel (%p176) target = $region24
        $region23: #{tpu_custom_call.1} parent=11 // pred_region
          _
        $region24: #{tpu_custom_call.1} parent=11 // pred_fallthru
          _
      $region12: #{tpu_custom_call.1} parent=5 // pred_fallthru
        _
      %p179 = scmp.lt.s32.totalorder %s14, 2
      // Predicated region
      $region25: #{tpu_custom_call.1} parent=5 // pred_check
        %p180 = pneg %p179
      $region26: #{tpu_custom_call.1} parent=5 // pred_check_branch
        %182 = sbr.rel (%p180) target = $region28
      $region27: #{tpu_custom_call.1} parent=5 // pred_region
        // Predicated region
        $region29: #{tpu_custom_call.1} parent=27 // pred_check
          %p183 = pneg %p34
        $region30: #{tpu_custom_call.1} parent=27 // pred_check_branch
          %185 = sbr.rel (%p183) target = $region32
        $region31: #{tpu_custom_call.1} parent=27 // pred_region
          %p186 = scmp.lt.s32.totalorder %s14, 1
          %s187 = scalar_select %p186, %s14, 1
          %s188 = smul.addr %s187, 2
          %s189 = smul.addr %s188, 8
          %s190 = scalar_lea.vmem %s0, %s189
        $region32: #{tpu_custom_call.1} parent=27 // pred_fallthru
          _
        // Predicated region
        $region33: #{tpu_custom_call.1} parent=27 // pred_check
          %p191 = pneg %p102
        $region34: #{tpu_custom_call.1} parent=27 // pred_check_branch
          %193 = sbr.rel (%p191) target = $region36
        $region35: #{tpu_custom_call.1} parent=27 // pred_region
          %p194 = scmp.lt.s32.totalorder %s14, 1
          %s195 = scalar_select %p194, %s14, 1
          %s196 = smul.addr %s195, 2
          %s197 = smul.addr %s196, 4
          %s198 = scalar_lea.vmem %s3, %s197
        $region36: #{tpu_custom_call.1} parent=27 // pred_fallthru
          _
      $region28: #{tpu_custom_call.1} parent=5 // pred_fallthru
        _
      %p199 = scmp.le.s32.totalorder 1, %s14
      %p200 = scmp.lt.s32.totalorder %s14, 3
      %p201 = pnand %p199, %p200
      %p202 = pneg %p201
      // Predicated region
      $region37: #{tpu_custom_call.1} parent=5 // pred_check
        _
      $region38: #{tpu_custom_call.1} parent=5 // pred_check_branch
        %204 = sbr.rel (%p201) target = $region40
      $region39: #{tpu_custom_call.1} parent=5 // pred_region
        %s205 = ssub.s32 %s14, 1
        %p206 = scmp.lt.s32.totalorder %s19, 1
        %s207 = scalar_select %p206, %s19, 1
        %s208 = smul.addr %s207, 2
        %s209 = smul.addr %s208, 8
        %s210 = scalar_lea.vmem %s0, %s209
        %p211 = pneg %p40
        %p212 = pneg %p37
        %p213 = pneg %p61
        %p214 = pneg %p58
        %p215 = pneg %p82
        %p216 = pneg %p79
        %p217 = scmp.lt.s32.totalorder %s19, 1
        %s218 = scalar_select %p217, %s19, 1
        %s219 = smul.addr %s218, 2
        %s220 = smul.addr %s219, 4
        %s221 = scalar_lea.vmem %s3, %s220
        %p222 = pneg %p108
        %p223 = pneg %p105
        %p224 = pneg %p129
        %p225 = pneg %p126
        %p226 = pneg %p155
        %p227 = pneg %p152
        %s228 = sand.u32 %s142, 1
        %s229 = scalar_lea.sflag [#allocation3], %s228
        %s230 = sand.u32 %s142, 1
        %s231 = smul.addr %s230, 16
        %s232 = scalar_lea.vmem [#allocation2], %s231
        %p233 = scmp.lt.s32.totalorder %s19, 1
        %s234 = scalar_select %p233, %s19, 1
        %s235 = smul.addr %s234, 2
        %s236 = smul.addr %s235, 8
        %s237 = scalar_lea.vmem %s0, %s236
        %p238 = scmp.lt.s32.totalorder %s19, 1
        %s239 = scalar_select %p238, %s19, 1
        %s240 = smul.addr %s239, 2
        %s241 = smul.addr %s240, 4
        %s242 = scalar_lea.vmem %s3, %s241
        %v243 = vld [vmem:[%s1] sm:$0xf]
        %v244 = vld [vmem:[%s1 + $0x4] sm:$0xf]
        %v245 = vld [vmem:[%s2] sm:$0x3]
        %v246 = vld [vmem:[%s4] sm:$0x1]
        %v247 = vlaneseq
        %v248 = vshrl.u32 %v247, 7
        %v249 = vadd.s32 %v248, 8
        %v250 = vlaneseq
        %v251 = vand.u32 %v250, 127
        %vm252 = vcmp.lt.s32.totalorder %v251, 0
        %v253 = vsub.s32 0, %v251
        %v254 = vsel %vm252, %v253, %v251
        %v255 = vshrl.u32 %v254, 4
        %v256 = vand.u32 %v254, 15
        %v257 = vsub.s32 0, %v256
        %v258 = vsel %vm252, %v257, %v256
        %vm259 = vcmp.ne.s32.totalorder %v258, 0
        %vm260 = vcmp.lt.s32.totalorder %v258, 0
        %vm261 = vmand %vm260, %vm259
        %v262 = vadd.s32 %v258, 16
        %v263 = vsel %vm261, %v262, %v258
        %vm264 = vcmp.eq.s32.totalorder %v263, %v248
        %vm265 = vcmp.eq.s32.totalorder %v263, %v249
        %v266 = vsel %vm264, 1, 0
        %v267 = vsel %vm265, 1, 0
        %v268 = vcvt.s32.f32 %v266
        %v269 = vcvt.s32.f32 %v267
        %v270 = vld [vmem:[%s237] sm:$0xff]
        %v271 = vld [vmem:[%s237 + $0x8] sm:$0xff]
        %v272 = vld [vmem:[%s242] sm:$0xf]
        %v273 = vld [vmem:[%s242 + $0x4] sm:$0xf]
        %v274 = vunpack.c.l.bf16 %v272
        %v275 = vunpack.c.l.bf16 %v273
        %277 = vset.pattern.permute.xlu0 0
        %278 = vperm.xlu0 %277, %v270
        %v279 = vpop.permute.xlu0 %278
        %282 = vset.pattern.permute.xlu0 0
        %283 = vperm.xlu0 %282, %v271
        %v284 = vpop.permute.xlu0 %283
        %v286 = vperm.slane %v245, 0
        %v287 = vmul.f32 %v279, %v286
        %v288 = vmul.f32 %v284, %v286
        %289 = vset.pattern.permute.xlu0 1
        %290 = vperm.xlu0 %289, %v270
        %v291 = vpop.permute.xlu0 %290
        %293 = vset.pattern.permute.xlu0 1
        %294 = vperm.xlu0 %293, %v271
        %v295 = vpop.permute.xlu0 %294
        %v297 = vperm.slane %v245, 1
        %v298 = vmul.f32 %v291, %v297
        %v299 = vmul.f32 %v295, %v297
        %v300 = vadd.f32 %v287, %v298
        %v301 = vadd.f32 %v288, %v299
        %304 = vrot.lane.b32.xlu0 %v300, 124
        %v305 = vpop.permute.xlu0 %304
        %306 = vrot.lane.b32.xlu0 %v301, 124
        %v307 = vpop.permute.xlu0 %306
        %310 = vxpose.xlu0.b32.start [1/16] %v305, 128
        %311 = vxpose.xlu0.b32.cont [2/16] %v307, 128
        %312 = vxpose.xlu0.b32.cont [3/16] 0.0, 128
        %313 = vxpose.xlu0.b32.cont [4/16] 0.0, 128
        %314 = vxpose.xlu0.b32.cont [5/16] 0.0, 128
        %315 = vxpose.xlu0.b32.cont [6/16] 0.0, 128
        %316 = vxpose.xlu0.b32.cont [7/16] 0.0, 128
        %317 = vxpose.xlu0.b32.cont [8/16] 0.0, 128
        %318 = vxpose.xlu0.b32.cont [9/16] 0.0, 128
        %319 = vxpose.xlu0.b32.cont [10/16] 0.0, 128
        %320 = vxpose.xlu0.b32.cont [11/16] 0.0, 128
        %321 = vxpose.xlu0.b32.cont [12/16] 0.0, 128
        %322 = vxpose.xlu0.b32.cont [13/16] 0.0, 128
        %323 = vxpose.xlu0.b32.cont [14/16] 0.0, 128
        %324 = vxpose.xlu0.b32.cont [15/16] 0.0, 128
        %325 = vxpose.xlu0.b32.end [16/16] 0.0, 128
        %v326 = vpop.trf.xlu0
        %v327 = vpop.trf.xlu0
        %v328 = vpop.trf.xlu0
        %v329 = vpop.trf.xlu0
        %v330 = vpop.trf.xlu0
        %v331 = vpop.trf.xlu0
        %v332 = vpop.trf.xlu0
        %v333 = vpop.trf.xlu0
        %v334 = vpop.trf.xlu0
        %v335 = vpop.trf.xlu0
        %v336 = vpop.trf.xlu0
        %v337 = vpop.trf.xlu0
        %v338 = vpop.trf.xlu0
        %v339 = vpop.trf.xlu0
        %v340 = vpop.trf.xlu0
        %v341 = vpop.trf.xlu0
        %v342 = vperm.slane %v243, 0
        %v343 = vmul.f32 %v279, %v342
        %v344 = vmul.f32 %v284, %v342
        %v345 = vperm.slane %v244, 0
        %v346 = vmul.f32 %v291, %v345
        %v347 = vmul.f32 %v295, %v345
        %v348 = vadd.f32 %v343, %v346
        %v349 = vadd.f32 %v344, %v347
        %v350 = vperm.slane %v243, 1
        %v351 = vmul.f32 %v279, %v350
        %v352 = vmul.f32 %v284, %v350
        %v353 = vperm.slane %v244, 1
        %v354 = vmul.f32 %v291, %v353
        %v355 = vmul.f32 %v295, %v353
        %v356 = vadd.f32 %v351, %v354
        %v357 = vadd.f32 %v352, %v355
        %v358 = vperm.slane %v243, 2
        %v359 = vmul.f32 %v279, %v358
        %v360 = vmul.f32 %v284, %v358
        %v361 = vperm.slane %v244, 2
        %v362 = vmul.f32 %v291, %v361
        %v363 = vmul.f32 %v295, %v361
        %v364 = vadd.f32 %v359, %v362
        %v365 = vadd.f32 %v360, %v363
        %v366 = vperm.slane %v243, 3
        %v367 = vmul.f32 %v279, %v366
        %v368 = vmul.f32 %v284, %v366
        %v369 = vperm.slane %v244, 3
        %v370 = vmul.f32 %v291, %v369
        %v371 = vmul.f32 %v295, %v369
        %v372 = vadd.f32 %v367, %v370
        %v373 = vadd.f32 %v368, %v371
        %v374 = vperm.slane %v300, 0
        %v375 = vlaneseq
        %v376 = vshrl.u32 %v375, 7
        %378 = vset.pattern.permute.xlu0 %v376
        %379 = vperm.xlu0 %378, %v374
        %v380 = vpop.permute.xlu0 %379
        %v381 = vperm.slane %v300, 1
        %v382 = vlaneseq
        %v383 = vshrl.u32 %v382, 7
        %385 = vset.pattern.permute.xlu0 %v383
        %386 = vperm.xlu0 %385, %v381
        %v387 = vpop.permute.xlu0 %386
        %v388 = vperm.slane %v300, 2
        %v389 = vlaneseq
        %v390 = vshrl.u32 %v389, 7
        %392 = vset.pattern.permute.xlu0 %v390
        %393 = vperm.xlu0 %392, %v388
        %v394 = vpop.permute.xlu0 %393
        %v395 = vperm.slane %v300, 3
        %v396 = vlaneseq
        %v397 = vshrl.u32 %v396, 7
        %399 = vset.pattern.permute.xlu0 %v397
        %400 = vperm.xlu0 %399, %v395
        %v401 = vpop.permute.xlu0 %400
        %v402 = vperm.slane %v300, 4
        %v403 = vlaneseq
        %v404 = vshrl.u32 %v403, 7
        %406 = vset.pattern.permute.xlu0 %v404
        %407 = vperm.xlu0 %406, %v402
        %v408 = vpop.permute.xlu0 %407
        %v409 = vperm.slane %v300, 5
        %v410 = vlaneseq
        %v411 = vshrl.u32 %v410, 7
        %413 = vset.pattern.permute.xlu0 %v411
        %414 = vperm.xlu0 %413, %v409
        %v415 = vpop.permute.xlu0 %414
        %v416 = vperm.slane %v300, 6
        %v417 = vlaneseq
        %v418 = vshrl.u32 %v417, 7
        %420 = vset.pattern.permute.xlu0 %v418
        %421 = vperm.xlu0 %420, %v416
        %v422 = vpop.permute.xlu0 %421
        %v423 = vperm.slane %v300, 7
        %v424 = vlaneseq
        %v425 = vshrl.u32 %v424, 7
        %427 = vset.pattern.permute.xlu0 %v425
        %428 = vperm.xlu0 %427, %v423
        %v429 = vpop.permute.xlu0 %428
        %v430 = vperm.slane %v301, 0
        %v431 = vlaneseq
        %v432 = vshrl.u32 %v431, 7
        %434 = vset.pattern.permute.xlu0 %v432
        %435 = vperm.xlu0 %434, %v430
        %v436 = vpop.permute.xlu0 %435
        %v437 = vperm.slane %v301, 1
        %v438 = vlaneseq
        %v439 = vshrl.u32 %v438, 7
        %441 = vset.pattern.permute.xlu0 %v439
        %442 = vperm.xlu0 %441, %v437
        %v443 = vpop.permute.xlu0 %442
        %v444 = vperm.slane %v301, 2
        %v445 = vlaneseq
        %v446 = vshrl.u32 %v445, 7
        %448 = vset.pattern.permute.xlu0 %v446
        %449 = vperm.xlu0 %448, %v444
        %v450 = vpop.permute.xlu0 %449
        %v451 = vperm.slane %v301, 3
        %v452 = vlaneseq
        %v453 = vshrl.u32 %v452, 7
        %455 = vset.pattern.permute.xlu0 %v453
        %456 = vperm.xlu0 %455, %v451
        %v457 = vpop.permute.xlu0 %456
        %v458 = vperm.slane %v301, 4
        %v459 = vlaneseq
        %v460 = vshrl.u32 %v459, 7
        %462 = vset.pattern.permute.xlu0 %v460
        %463 = vperm.xlu0 %462, %v458
        %v464 = vpop.permute.xlu0 %463
        %v465 = vperm.slane %v301, 5
        %v466 = vlaneseq
        %v467 = vshrl.u32 %v466, 7
        %469 = vset.pattern.permute.xlu0 %v467
        %470 = vperm.xlu0 %469, %v465
        %v471 = vpop.permute.xlu0 %470
        %v472 = vperm.slane %v301, 6
        %v473 = vlaneseq
        %v474 = vshrl.u32 %v473, 7
        %476 = vset.pattern.permute.xlu0 %v474
        %477 = vperm.xlu0 %476, %v472
        %v478 = vpop.permute.xlu0 %477
        %v479 = vperm.slane %v301, 7
        %v480 = vlaneseq
        %v481 = vshrl.u32 %v480, 7
        %483 = vset.pattern.permute.xlu0 %v481
        %484 = vperm.xlu0 %483, %v479
        %v485 = vpop.permute.xlu0 %484
        %v486 = vmul.f32 %v380, %v326
        %v487 = vmul.f32 %v387, %v326
        %v488 = vmul.f32 %v394, %v326
        %v489 = vmul.f32 %v401, %v326
        %v490 = vmul.f32 %v408, %v326
        %v491 = vmul.f32 %v415, %v326
        %v492 = vmul.f32 %v422, %v326
        %v493 = vmul.f32 %v429, %v326
        %v494 = vmul.f32 %v436, %v326
        %v495 = vmul.f32 %v443, %v326
        %v496 = vmul.f32 %v450, %v326
        %v497 = vmul.f32 %v457, %v326
        %v498 = vmul.f32 %v464, %v326
        %v499 = vmul.f32 %v471, %v326
        %v500 = vmul.f32 %v478, %v326
        %v501 = vmul.f32 %v485, %v326
        %v502 = vmul.f32 %v486, 0.2
        %v503 = vmul.f32 %v487, 0.2
        %v504 = vmul.f32 %v488, 0.2
        %v505 = vmul.f32 %v489, 0.2
        %v506 = vmul.f32 %v490, 0.2
        %v507 = vmul.f32 %v491, 0.2
        %v508 = vmul.f32 %v492, 0.2
        %v509 = vmul.f32 %v493, 0.2
        %v510 = vmul.f32 %v494, 0.2
        %v511 = vmul.f32 %v495, 0.2
        %v512 = vmul.f32 %v496, 0.2
        %v513 = vmul.f32 %v497, 0.2
        %v514 = vmul.f32 %v498, 0.2
        %v515 = vmul.f32 %v499, 0.2
        %v516 = vmul.f32 %v500, 0.2
        %v517 = vmul.f32 %v501, 0.2
        %v518 = vmax.f32 %v486, %v502
        %v519 = vmax.f32 %v487, %v503
        %v520 = vmax.f32 %v488, %v504
        %v521 = vmax.f32 %v489, %v505
        %v522 = vmax.f32 %v490, %v506
        %v523 = vmax.f32 %v491, %v507
        %v524 = vmax.f32 %v492, %v508
        %v525 = vmax.f32 %v493, %v509
        %v526 = vmax.f32 %v494, %v510
        %v527 = vmax.f32 %v495, %v511
        %v528 = vmax.f32 %v496, %v512
        %v529 = vmax.f32 %v497, %v513
        %v530 = vmax.f32 %v498, %v514
        %v531 = vmax.f32 %v499, %v515
        %v532 = vmax.f32 %v500, %v516
        %v533 = vmax.f32 %v501, %v517
        %vm534 = vcmask 125952
        %v535 = vsel %vm534, %v518, -inf
        %536 = vmax.xlane.f32.xlu0 %v535
        %v537 = vpop.xlane.xlu0 %536
        %v538 = vsel %vm534, %v519, -inf
        %539 = vmax.xlane.f32.xlu0 %v538
        %v540 = vpop.xlane.xlu0 %539
        %v541 = vsel %vm534, %v520, -inf
        %542 = vmax.xlane.f32.xlu0 %v541
        %v543 = vpop.xlane.xlu0 %542
        %v544 = vsel %vm534, %v521, -inf
        %545 = vmax.xlane.f32.xlu0 %v544
        %v546 = vpop.xlane.xlu0 %545
        %v547 = vsel %vm534, %v522, -inf
        %548 = vmax.xlane.f32.xlu0 %v547
        %v549 = vpop.xlane.xlu0 %548
        %v550 = vsel %vm534, %v523, -inf
        %551 = vmax.xlane.f32.xlu0 %v550
        %v552 = vpop.xlane.xlu0 %551
        %v553 = vsel %vm534, %v524, -inf
        %554 = vmax.xlane.f32.xlu0 %v553
        %v555 = vpop.xlane.xlu0 %554
        %v556 = vsel %vm534, %v525, -inf
        %557 = vmax.xlane.f32.xlu0 %v556
        %v558 = vpop.xlane.xlu0 %557
        %v559 = vsel %vm534, %v526, -inf
        %560 = vmax.xlane.f32.xlu0 %v559
        %v561 = vpop.xlane.xlu0 %560
        %v562 = vsel %vm534, %v527, -inf
        %563 = vmax.xlane.f32.xlu0 %v562
        %v564 = vpop.xlane.xlu0 %563
        %v565 = vsel %vm534, %v528, -inf
        %566 = vmax.xlane.f32.xlu0 %v565
        %v567 = vpop.xlane.xlu0 %566
        %v568 = vsel %vm534, %v529, -inf
        %569 = vmax.xlane.f32.xlu0 %v568
        %v570 = vpop.xlane.xlu0 %569
        %v571 = vsel %vm534, %v530, -inf
        %572 = vmax.xlane.f32.xlu0 %v571
        %v573 = vpop.xlane.xlu0 %572
        %v574 = vsel %vm534, %v531, -inf
        %575 = vmax.xlane.f32.xlu0 %v574
        %v576 = vpop.xlane.xlu0 %575
        %v577 = vsel %vm534, %v532, -inf
        %578 = vmax.xlane.f32.xlu0 %v577
        %v579 = vpop.xlane.xlu0 %578
        %v580 = vsel %vm534, %v533, -inf
        %581 = vmax.xlane.f32.xlu0 %v580
        %v582 = vpop.xlane.xlu0 %581
        %v583 = vsub.f32 %v518, %v537
        %v584 = vsub.f32 %v519, %v540
        %v585 = vsub.f32 %v520, %v543
        %v586 = vsub.f32 %v521, %v546
        %v587 = vsub.f32 %v522, %v549
        %v588 = vsub.f32 %v523, %v552
        %v589 = vsub.f32 %v524, %v555
        %v590 = vsub.f32 %v525, %v558
        %v591 = vsub.f32 %v526, %v561
        %v592 = vsub.f32 %v527, %v564
        %v593 = vsub.f32 %v528, %v567
        %v594 = vsub.f32 %v529, %v570
        %v595 = vsub.f32 %v530, %v573
        %v596 = vsub.f32 %v531, %v576
        %v597 = vsub.f32 %v532, %v579
        %v598 = vsub.f32 %v533, %v582
        %v599 = vmul.f32 %v583, 1.442695
        %v600 = vpow.pop %v599
        %v601 = vmul.f32 %v584, 1.442695
        %v602 = vpow.pop %v601
        %v603 = vmul.f32 %v585, 1.442695
        %v604 = vpow.pop %v603
        %v605 = vmul.f32 %v586, 1.442695
        %v606 = vpow.pop %v605
        %v607 = vmul.f32 %v587, 1.442695
        %v608 = vpow.pop %v607
        %v609 = vmul.f32 %v588, 1.442695
        %v610 = vpow.pop %v609
        %v611 = vmul.f32 %v589, 1.442695
        %v612 = vpow.pop %v611
        %v613 = vmul.f32 %v590, 1.442695
        %v614 = vpow.pop %v613
        %v615 = vmul.f32 %v591, 1.442695
        %v616 = vpow.pop %v615
        %v617 = vmul.f32 %v592, 1.442695
        %v618 = vpow.pop %v617
        %v619 = vmul.f32 %v593, 1.442695
        %v620 = vpow.pop %v619
        %v621 = vmul.f32 %v594, 1.442695
        %v622 = vpow.pop %v621
        %v623 = vmul.f32 %v595, 1.442695
        %v624 = vpow.pop %v623
        %v625 = vmul.f32 %v596, 1.442695
        %v626 = vpow.pop %v625
        %v627 = vmul.f32 %v597, 1.442695
        %v628 = vpow.pop %v627
        %v629 = vmul.f32 %v598, 1.442695
        %v630 = vpow.pop %v629
        %v631 = vsel %vm534, %v600, 0.0
        %632 = vadd.xlane.f32.xlu0 %v631
        %v633 = vpop.xlane.xlu0 %632
        %v634 = vsel %vm534, %v602, 0.0
        %635 = vadd.xlane.f32.xlu0 %v634
        %v636 = vpop.xlane.xlu0 %635
        %v637 = vsel %vm534, %v604, 0.0
        %638 = vadd.xlane.f32.xlu0 %v637
        %v639 = vpop.xlane.xlu0 %638
        %v640 = vsel %vm534, %v606, 0.0
        %641 = vadd.xlane.f32.xlu0 %v640
        %v642 = vpop.xlane.xlu0 %641
        %v643 = vsel %vm534, %v608, 0.0
        %644 = vadd.xlane.f32.xlu0 %v643
        %v645 = vpop.xlane.xlu0 %644
        %v646 = vsel %vm534, %v610, 0.0
        %647 = vadd.xlane.f32.xlu0 %v646
        %v648 = vpop.xlane.xlu0 %647
        %v649 = vsel %vm534, %v612, 0.0
        %650 = vadd.xlane.f32.xlu0 %v649
        %v651 = vpop.xlane.xlu0 %650
        %v652 = vsel %vm534, %v614, 0.0
        %653 = vadd.xlane.f32.xlu0 %v652
        %v654 = vpop.xlane.xlu0 %653
        %v655 = vsel %vm534, %v616, 0.0
        %656 = vadd.xlane.f32.xlu0 %v655
        %v657 = vpop.xlane.xlu0 %656
        %v658 = vsel %vm534, %v618, 0.0
        %659 = vadd.xlane.f32.xlu0 %v658
        %v660 = vpop.xlane.xlu0 %659
        %v661 = vsel %vm534, %v620, 0.0
        %662 = vadd.xlane.f32.xlu0 %v661
        %v663 = vpop.xlane.xlu0 %662
        %v664 = vsel %vm534, %v622, 0.0
        %665 = vadd.xlane.f32.xlu0 %v664
        %v666 = vpop.xlane.xlu0 %665
        %v667 = vsel %vm534, %v624, 0.0
        %668 = vadd.xlane.f32.xlu0 %v667
        %v669 = vpop.xlane.xlu0 %668
        %v670 = vsel %vm534, %v626, 0.0
        %671 = vadd.xlane.f32.xlu0 %v670
        %v672 = vpop.xlane.xlu0 %671
        %v673 = vsel %vm534, %v628, 0.0
        %674 = vadd.xlane.f32.xlu0 %v673
        %v675 = vpop.xlane.xlu0 %674
        %v676 = vsel %vm534, %v630, 0.0
        %677 = vadd.xlane.f32.xlu0 %v676
        %v678 = vpop.xlane.xlu0 %677
        %v679 = vrcp.pop %v633
        %v680 = vrcp.pop %v636
        %v681 = vrcp.pop %v639
        %v682 = vrcp.pop %v642
        %v683 = vrcp.pop %v645
        %v684 = vrcp.pop %v648
        %v685 = vrcp.pop %v651
        %v686 = vrcp.pop %v654
        %v687 = vrcp.pop %v657
        %v688 = vrcp.pop %v660
        %v689 = vrcp.pop %v663
        %v690 = vrcp.pop %v666
        %v691 = vrcp.pop %v669
        %v692 = vrcp.pop %v672
        %v693 = vrcp.pop %v675
        %v694 = vrcp.pop %v678
        %v697 = vrot.slane %v274, 1
        %v698 = vrot.slane %v274, 2
        %v699 = vrot.slane %v274, 3
        %v700 = vrot.slane %v274, 4
        %v701 = vrot.slane %v274, 5
        %v702 = vrot.slane %v274, 6
        %v703 = vrot.slane %v274, 7
        %v704 = vrot.slane %v275, 1
        %v705 = vrot.slane %v275, 2
        %v706 = vrot.slane %v275, 3
        %v707 = vrot.slane %v275, 4
        %v708 = vrot.slane %v275, 5
        %v709 = vrot.slane %v275, 6
        %v710 = vrot.slane %v275, 7
        %v711 = vperm.slane %v274, 0
        %v712 = vperm.slane %v697, 0
        %v713 = vperm.slane %v698, 0
        %v714 = vperm.slane %v699, 0
        %v715 = vperm.slane %v700, 0
        %v716 = vperm.slane %v701, 0
        %v717 = vperm.slane %v702, 0
        %v718 = vperm.slane %v703, 0
        %v719 = vperm.slane %v275, 0
        %v720 = vperm.slane %v704, 0
        %v721 = vperm.slane %v705, 0
        %v722 = vperm.slane %v706, 0
        %v723 = vperm.slane %v707, 0
        %v724 = vperm.slane %v708, 0
        %v725 = vperm.slane %v709, 0
        %v726 = vperm.slane %v710, 0
        %v743 = vmul.f32 %v679, %v711
        %v744 = vmul.f32 %v680, %v712
        %v745 = vmul.f32 %v681, %v713
        %v746 = vmul.f32 %v682, %v714
        %v747 = vmul.f32 %v683, %v715
        %v748 = vmul.f32 %v684, %v716
        %v749 = vmul.f32 %v685, %v717
        %v750 = vmul.f32 %v686, %v718
        %v751 = vmul.f32 %v687, %v719
        %v752 = vmul.f32 %v688, %v720
        %v753 = vmul.f32 %v689, %v721
        %v754 = vmul.f32 %v690, %v722
        %v755 = vmul.f32 %v691, %v723
        %v756 = vmul.f32 %v692, %v724
        %v757 = vmul.f32 %v693, %v725
        %v758 = vmul.f32 %v694, %v726
        %v759 = vmul.f32 %v600, %v743
        %v760 = vmul.f32 %v602, %v744
        %v761 = vmul.f32 %v604, %v745
        %v762 = vmul.f32 %v606, %v746
        %v763 = vmul.f32 %v608, %v747
        %v764 = vmul.f32 %v610, %v748
        %v765 = vmul.f32 %v612, %v749
        %v766 = vmul.f32 %v614, %v750
        %v767 = vmul.f32 %v616, %v751
        %v768 = vmul.f32 %v618, %v752
        %v769 = vmul.f32 %v620, %v753
        %v770 = vmul.f32 %v622, %v754
        %v771 = vmul.f32 %v624, %v755
        %v772 = vmul.f32 %v626, %v756
        %v773 = vmul.f32 %v628, %v757
        %v774 = vmul.f32 %v630, %v758
        %v791 = vrot.slane %v760, 7
        %vm792 = vcmask 1041409
        %v793 = vsel %vm792, %v791, %v759
        %v794 = vrot.slane %v761, 6
        %vm795 = vcmask 1042434
        %v796 = vsel %vm795, %v794, %v793
        %v797 = vrot.slane %v762, 5
        %vm798 = vcmask 1043459
        %v799 = vsel %vm798, %v797, %v796
        %v800 = vrot.slane %v763, 4
        %vm801 = vcmask 1044484
        %v802 = vsel %vm801, %v800, %v799
        %v803 = vrot.slane %v764, 3
        %vm804 = vcmask 1045509
        %v805 = vsel %vm804, %v803, %v802
        %v806 = vrot.slane %v765, 2
        %vm807 = vcmask 1046534
        %v808 = vsel %vm807, %v806, %v805
        %v809 = vrot.slane %v766, 1
        %vm810 = vcmask 1047559
        %v811 = vsel %vm810, %v809, %v808
        %v812 = vrot.slane %v768, 7
        %v813 = vsel %vm792, %v812, %v767
        %v814 = vrot.slane %v769, 6
        %v815 = vsel %vm795, %v814, %v813
        %v816 = vrot.slane %v770, 5
        %v817 = vsel %vm798, %v816, %v815
        %v818 = vrot.slane %v771, 4
        %v819 = vsel %vm801, %v818, %v817
        %v820 = vrot.slane %v772, 3
        %v821 = vsel %vm804, %v820, %v819
        %v822 = vrot.slane %v773, 2
        %v823 = vsel %vm807, %v822, %v821
        %v824 = vrot.slane %v774, 1
        %v825 = vsel %vm810, %v824, %v823
        %v828 = vrot.slane %v759, 1
        %v829 = vsel %vm792, %v760, %v828
        %v830 = vrot.slane %v761, 7
        %v831 = vsel %vm795, %v830, %v829
        %v832 = vrot.slane %v762, 6
        %v833 = vsel %vm798, %v832, %v831
        %v834 = vrot.slane %v763, 5
        %v835 = vsel %vm801, %v834, %v833
        %v836 = vrot.slane %v764, 4
        %v837 = vsel %vm804, %v836, %v835
        %v838 = vrot.slane %v765, 3
        %v839 = vsel %vm807, %v838, %v837
        %v840 = vrot.slane %v766, 2
        %v841 = vsel %vm810, %v840, %v839
        %v842 = vrot.slane %v767, 1
        %v843 = vsel %vm792, %v768, %v842
        %v844 = vrot.slane %v769, 7
        %v845 = vsel %vm795, %v844, %v843
        %v846 = vrot.slane %v770, 6
        %v847 = vsel %vm798, %v846, %v845
        %v848 = vrot.slane %v771, 5
        %v849 = vsel %vm801, %v848, %v847
        %v850 = vrot.slane %v772, 4
        %v851 = vsel %vm804, %v850, %v849
        %v852 = vrot.slane %v773, 3
        %v853 = vsel %vm807, %v852, %v851
        %v854 = vrot.slane %v774, 2
        %v855 = vsel %vm810, %v854, %v853
        %856 = vrot.lane.b32.xlu0 %v841, 16
        %v857 = vpop.permute.xlu0 %856
        %858 = vrot.lane.b32.xlu0 %v855, 16
        %v859 = vpop.permute.xlu0 %858
        %v862 = vrot.slane %v759, 2
        %v863 = vrot.slane %v760, 1
        %v864 = vsel %vm792, %v863, %v862
        %v865 = vsel %vm795, %v761, %v864
        %v866 = vrot.slane %v762, 7
        %v867 = vsel %vm798, %v866, %v865
        %v868 = vrot.slane %v763, 6
        %v869 = vsel %vm801, %v868, %v867
        %v870 = vrot.slane %v764, 5
        %v871 = vsel %vm804, %v870, %v869
        %v872 = vrot.slane %v765, 4
        %v873 = vsel %vm807, %v872, %v871
        %v874 = vrot.slane %v766, 3
        %v875 = vsel %vm810, %v874, %v873
        %v876 = vrot.slane %v767, 2
        %v877 = vrot.slane %v768, 1
        %v878 = vsel %vm792, %v877, %v876
        %v879 = vsel %vm795, %v769, %v878
        %v880 = vrot.slane %v770, 7
        %v881 = vsel %vm798, %v880, %v879
        %v882 = vrot.slane %v771, 6
        %v883 = vsel %vm801, %v882, %v881
        %v884 = vrot.slane %v772, 5
        %v885 = vsel %vm804, %v884, %v883
        %v886 = vrot.slane %v773, 4
        %v887 = vsel %vm807, %v886, %v885
        %v888 = vrot.slane %v774, 3
        %v889 = vsel %vm810, %v888, %v887
        %890 = vrot.lane.b32.xlu0 %v875, 32
        %v891 = vpop.permute.xlu0 %890
        %892 = vrot.lane.b32.xlu0 %v889, 32
        %v893 = vpop.permute.xlu0 %892
        %v896 = vrot.slane %v759, 3
        %v897 = vrot.slane %v760, 2
        %v898 = vsel %vm792, %v897, %v896
        %v899 = vrot.slane %v761, 1
        %v900 = vsel %vm795, %v899, %v898
        %v901 = vsel %vm798, %v762, %v900
        %v902 = vrot.slane %v763, 7
        %v903 = vsel %vm801, %v902, %v901
        %v904 = vrot.slane %v764, 6
        %v905 = vsel %vm804, %v904, %v903
        %v906 = vrot.slane %v765, 5
        %v907 = vsel %vm807, %v906, %v905
        %v908 = vrot.slane %v766, 4
        %v909 = vsel %vm810, %v908, %v907
        %v910 = vrot.slane %v767, 3
        %v911 = vrot.slane %v768, 2
        %v912 = vsel %vm792, %v911, %v910
        %v913 = vrot.slane %v769, 1
        %v914 = vsel %vm795, %v913, %v912
        %v915 = vsel %vm798, %v770, %v914
        %v916 = vrot.slane %v771, 7
        %v917 = vsel %vm801, %v916, %v915
        %v918 = vrot.slane %v772, 6
        %v919 = vsel %vm804, %v918, %v917
        %v920 = vrot.slane %v773, 5
        %v921 = vsel %vm807, %v920, %v919
        %v922 = vrot.slane %v774, 4
        %v923 = vsel %vm810, %v922, %v921
        %924 = vrot.lane.b32.xlu0 %v909, 48
        %v925 = vpop.permute.xlu0 %924
        %926 = vrot.lane.b32.xlu0 %v923, 48
        %v927 = vpop.permute.xlu0 %926
        %vm930 = vcmask 130048
        %v931 = vsel %vm930, %v811, %v857
        %v932 = vsel %vm930, %v825, %v859
        %vm933 = vcmask 261120
        %v934 = vsel %vm933, %v931, %v891
        %v935 = vsel %vm933, %v932, %v893
        %vm936 = vcmask 392192
        %v937 = vsel %vm936, %v934, %v925
        %v938 = vsel %vm936, %v935, %v927
        %v939 = vadd.f32 %v937, %v268
        %v940 = vadd.f32 %v938, %v269
        %v942 = vperm.slane %v246, 0
        %vm944 = vcmask 523264
        %v946 = vsel %vm944, %v939, 0
        %v949 = vsel %vm944, %v940, 0
        %951 = vmatpush.msra.mxu0 0.0
        %952 = vmatpush.msra.mxu0 0.0
        %953 = vmatpush.msra.mxu0 0.0
        %954 = vmatpush.msra.mxu0 0.0
        %955 = vmatpush.msra.mxu0 0.0
        %956 = vmatpush.msra.mxu0 0.0
        %957 = vmatpush.msra.mxu0 0.0
        %958 = vmatpush.msra.mxu0 0.0
        %959 = vmatpush.msra.mxu0 %v373
        %960 = vmatpush.msra.mxu0 %v372
        %961 = vmatpush.msra.mxu0 %v365
        %962 = vmatpush.msra.mxu0 %v364
        %963 = vmatpush.msra.mxu0 %v357
        %964 = vmatpush.msra.mxu0 %v356
        %965 = vmatpush.msra.mxu0 %v349
        %966 = vmatpush.msra.mxu0 %v348
        %967 = vmatmul.f32.gmra.mxu0 %v946
        %v968 = vpop.f32.mrf.mxu0
        %v969 = vadd.f32 %v942, %v968
        %970 = vmatmul.f32.gmra.mxu0 %v949
        %v971 = vpop.f32.mrf.mxu0
        %v972 = vadd.f32 %v942, %v971
        %973 = vdwg.mxu0
        %976 = vrot.lane.b32.xlu0 %v937, 64
        %v977 = vpop.permute.xlu0 %976
        %978 = vrot.lane.b32.xlu0 %v938, 64
        %v979 = vpop.permute.xlu0 %978
        %v982 = vsel %vm944, %v969, %v977
        %v983 = vsel %vm944, %v972, %v979
        %984 = vst [vmem:[%s232] sm:$0xff] %v982
        %985 = vst [vmem:[%s232 + $0x8] sm:$0xff] %v983
        %s986 = sand.u32 %s142, 1
        %s987 = scalar_lea.sflag [#allocation3], %s986
        %s988 = sand.u32 %s142, 1
        %s989 = smul.addr %s988, 16
        %s990 = scalar_lea.vmem [#allocation2], %s989
        // Predicated region
        $region41: #{tpu_custom_call.1} parent=39 // pred_check
          %p991 = pneg %p152
        $region42: #{tpu_custom_call.1} parent=39 // pred_check_branch
          %993 = sbr.rel (%p991) target = $region44
        $region43: #{tpu_custom_call.1} parent=39 // pred_region
          %995 = vsyncadd %s987, 0
          %s996 = smul.addr %s19, 2
          %s997 = smul.addr %s996, 8
          %s998 = scalar_lea.hbm %s5, %s997
          %s999 = sshll.u32 %s990, 4
          %s1000 = int_to_ptr.vmem [resolvable:$true] %s999
          %s1001 = sshll.u32 %s998, 4
          %s1002 = int_to_ptr.hbm [resolvable:$true] %s1001
          %1007 = dma.vmem_to_hbm [thread:$0]  %s1000, 256, %s1002, %s987, 128, 128, 8
        $region44: #{tpu_custom_call.1} parent=39 // pred_fallthru
          _
      $region40: #{tpu_custom_call.1} parent=5 // pred_fallthru
        _
      %p1008 = scmp.le.s32.totalorder 2, %s14
      // Predicated region
      $region45: #{tpu_custom_call.1} parent=5 // pred_check
        %p1009 = pneg %p1008
      $region46: #{tpu_custom_call.1} parent=5 // pred_check_branch
        %1011 = sbr.rel (%p1009) target = $region48
      $region47: #{tpu_custom_call.1} parent=5 // pred_region
        %s1012 = ssub.s32 %s14, 2
        // Predicated region
        $region49: #{tpu_custom_call.1} parent=47 // pred_check
          %p1013 = pneg %p158
        $region50: #{tpu_custom_call.1} parent=47 // pred_check_branch
          %1015 = sbr.rel (%p1013) target = $region52
        $region51: #{tpu_custom_call.1} parent=47 // pred_region
          %s1016 = sand.u32 %s143, 1
          %s1017 = scalar_lea.sflag [#allocation3], %s1016
          %s1018 = sand.u32 %s143, 1
          %s1019 = smul.addr %s1018, 16
          %s1020 = scalar_lea.vmem [#allocation2], %s1019
          %1022 = dma.done %s1017, 256
        $region52: #{tpu_custom_call.1} parent=47 // pred_fallthru
          _
      $region48: #{tpu_custom_call.1} parent=5 // pred_fallthru
        _
    $region6: #{tpu_custom_call.1} parent=1 // loop_footer
      %s18 = sadd.s32 1, %s14
    $region7: #{tpu_custom_call.1} parent=1 // loop_footer_branch
      %13 = sbr.rel target = $region3
    $region8: #{tpu_custom_call.1} parent=1 // loop_exit
      _
    %1023 = vsyncpa [#allocation3], 1
    %s1024 = scalar_lea.sflag [#allocation3], 1
    %1025 = vsyncpa %s1024, 1

</llo_original>
